<compile_context>
chip_gen: v7x
topology: tpu7x:2x2x1
jax: 0.10.0
libtpu: 0.0.40
codegen_flags: <defaults>
</compile_context>

<pallas_src>
import jax
import jax.numpy as jnp
from jax import lax
from jax.experimental import pallas as pl
from jax.experimental.pallas import tpu as pltpu


def _round_up(a: int, b: int) -> int:
    return ((a + b - 1) // b) * b


# ----------------------------- Pallas kernel ------------------------------ #
def linear_kernel(x_ref, w_ref, b_ref, o_ref, acc_ref):
    # grid = (N//tn, M//tm, K//tk), K innermost ("arbitrary").
    #   x_ref : (tm, tk)  token tile
    #   w_ref : (tn, tk)  weight tile in PyTorch (out, in) layout
    #   b_ref : (1, tn)   bias slab
    #   o_ref : (tm, tn)  output tile (resident across the K axis)
    #   acc_ref: (tm, tn) f32 accumulator scratch
    k = pl.program_id(2)

    @pl.when(k == 0)
    def _():
        acc_ref[...] = jnp.zeros_like(acc_ref)

    # Contract x's K dim with w's K dim (i.e. x @ W^T) directly on the MXU;
    # no transposed copy of the weight is needed.
    acc_ref[...] += lax.dot_general(
        x_ref[...], w_ref[...],
        dimension_numbers=(((1,), (1,)), ((), ())),
        preferred_element_type=jnp.float32)

    @pl.when(k == pl.num_programs(2) - 1)
    def _():
        o_ref[...] = (acc_ref[...] + b_ref[...].astype(jnp.float32)).astype(o_ref.dtype)


def _vmem_limit_bytes(tm, tn, tk, in_bytes, out_bytes):
    x_t = tm * tk * in_bytes
    w_t = tn * tk * in_bytes
    b_t = tn * 4
    o_t = tm * tn * out_bytes
    acc = tm * tn * 4
    est = 2 * (x_t + w_t + b_t + o_t) + acc          # double-buffered I/O + scratch
    # Generous headroom, but stay well under v7x's 64 MiB physical VMEM / TC.
    return int(min(48 * 1024 * 1024, max(2 * est + (2 << 20), 16 << 20)))


def wanda_linear_forward(x, weight, bias, *, tm=256, tn=256, tk=512,
                         compute_dtype=None):
    """y = x @ weight.T + bias with a tiled Pallas TPU kernel.

    x:      (B, S, in_features)
    weight: (out_features, in_features)   -- PyTorch nn.Linear convention
    bias:   (out_features,)
    compute_dtype: optional dtype (e.g. jnp.bfloat16) for x/weight on the MXU;
                   accumulation is always f32, output keeps x.dtype.
    """
    B, S, D = x.shape
    N, D_w = weight.shape
    assert D == D_w, "in_features mismatch"
    M = B * S
    out_dtype = x.dtype
    cd = compute_dtype if compute_dtype is not None else x.dtype

    # Shrink tiles for small problems, keeping (8, 128) alignment.
    tm = min(tm, _round_up(M, 8))
    tn = min(tn, _round_up(N, 128))
    tk = min(tk, _round_up(D, 128))

    Mp, Np, Kp = _round_up(M, tm), _round_up(N, tn), _round_up(D, tk)

    x2 = x.reshape(M, D).astype(cd)
    w = weight.astype(cd)                    # keep (out, in) layout -- no .T copy
    b2 = bias.reshape(1, N).astype(jnp.float32)
    if (Mp, Kp) != (M, D):
        x2 = jnp.pad(x2, ((0, Mp - M), (0, Kp - D)))
    if (Np, Kp) != (N, D):
        w = jnp.pad(w, ((0, Np - N), (0, Kp - D)))
    if Np != N:
        b2 = jnp.pad(b2, ((0, 0), (0, Np - N)))

    in_bytes = jnp.dtype(cd).itemsize
    out_bytes = jnp.dtype(out_dtype).itemsize

    out = pl.pallas_call(
        linear_kernel,
        out_shape=jax.ShapeDtypeStruct((Mp, Np), out_dtype),
        grid_spec=pltpu.PrefetchScalarGridSpec(
            num_scalar_prefetch=0,
            # N tiles outer (weight column-strip quasi-stationary for small M),
            # M tiles middle, K (reduction) innermost.
            grid=(Np // tn, Mp // tm, Kp // tk),
            in_specs=[
                pl.BlockSpec((tm, tk), lambda j, i, k: (i, k)),   # x tile
                pl.BlockSpec((tn, tk), lambda j, i, k: (j, k)),   # W (out,in) tile
                pl.BlockSpec((1, tn), lambda j, i, k: (0, j)),    # bias slab
            ],
            out_specs=pl.BlockSpec((tm, tn), lambda j, i, k: (i, j)),
            scratch_shapes=[pltpu.VMEM((tm, tn), jnp.float32)],
        ),
        compiler_params=pltpu.CompilerParams(
            dimension_semantics=("parallel", "parallel", "arbitrary"),
            vmem_limit_bytes=_vmem_limit_bytes(tm, tn, tk, in_bytes, out_bytes)),
    )(x2, w, b2)

    return out[:M, :N].reshape(B, S, N)


# ------------------------ Wanda statistics / pruning ----------------------- #
def wanda_scaler_row(x, nsamples):
    """add_batch semantics for a single batch: scaler_row[c] = ||inp_c||_2^2 / nsamples,
    where inp is the (tokens, features) activation matrix transposed and
    nsamples counts batches (inp.shape[0]), matching the PyTorch source."""
    x2 = x.reshape(-1, x.shape[-1]).astype(jnp.float32)
    return jnp.sum(x2 * x2, axis=0) / nsamples


def wanda_prune_weight(weight, scaler_row, sparsity_ratio=0.5):
    """prune() with prune_n == 0, use_variant == False:
    zero the smallest `sparsity_ratio` fraction of each row by
    W_metric = |W| * sqrt(scaler_row)."""
    W_metric = jnp.abs(weight) * jnp.sqrt(scaler_row)[None, :]
    k = int(weight.shape[1] * sparsity_ratio)
    order = jnp.argsort(W_metric, axis=-1, stable=True)    # ascending
    pruned_idx = order[:, :k]                              # smallest-k per row
    row_idx = jnp.arange(weight.shape[0])[:, None]
    mask = jnp.zeros(weight.shape, dtype=bool).at[row_idx, pruned_idx].set(True)
    return jnp.where(mask, 0.0, weight)
    # TODO(synk): the use_variant=True alpha-bisection path (host-side while
    # loop over sorted cumsums) is not modeled; only the default unstructured
    # top-k path is reproduced.


# ---------------------------------- main ----------------------------------- #
if __name__ == "__main__":
    # Small but non-trivial shapes: exercises padding on every axis plus
    # multiple N-tiles and multiple K-steps (accumulator path).
    B, S, D, N = 2, 24, 640, 384     # batch, seq, in_features, out_features

    key = jax.random.PRNGKey(0)
    kx, kw, kb = jax.random.split(key, 3)
    x = jax.random.normal(kx, (B, S, D), dtype=jnp.float32)
    weight = jax.random.normal(kw, (N, D), dtype=jnp.float32) * 0.05
    bias = jax.random.normal(kb, (N,), dtype=jnp.float32) * 0.01

    # Wanda calibration (add_batch) + pruning (prune) applied to the weight,
    # so the forward kernel runs on the pruned Linear, like the wrapped module.
    scaler_row = wanda_scaler_row(x, nsamples=B)
    weight_pruned = wanda_prune_weight(weight, scaler_row, sparsity_ratio=0.5)

    # Reference (plain JAX) forward.
    y_ref = (x.reshape(-1, D) @ weight_pruned.T + bias).reshape(B, S, N)

    # f32 path: strict check.
    y = jax.block_until_ready(wanda_linear_forward(x, weight_pruned, bias))
    assert y.shape == (B, S, N)
    assert jnp.allclose(y, y_ref, atol=1e-4, rtol=1e-4), "f32 mismatch vs reference"

    # bf16 compute path (f32 accumulate inside the kernel): loose check.
    y_bf16 = jax.block_until_ready(
        wanda_linear_forward(x, weight_pruned, bias, compute_dtype=jnp.bfloat16))
    assert y_bf16.shape == (B, S, N)
    assert jnp.allclose(y_bf16, y_ref, atol=5e-2, rtol=5e-2), "bf16 mismatch vs reference"

    print("KERNEL_OK")
</pallas_src>

<mosaic_0001>
module attributes {stable_mosaic.version = 11 : i64} {
  func.func @linear_kernel(%arg0: i32, %arg1: i32, %arg2: i32, %arg3: memref<48x512xf32, #tpu.memory_space<vmem>>, %arg4: memref<256x512xf32, #tpu.memory_space<vmem>>, %arg5: memref<1x256xf32, #tpu.memory_space<vmem>>, %arg6: memref<48x256xf32, #tpu.memory_space<vmem>>, %arg7: memref<48x256xf32, #tpu.memory_space<vmem>>) attributes {dimension_semantics = [#tpu.dimension_semantics<parallel>, #tpu.dimension_semantics<parallel>, #tpu.dimension_semantics<arbitrary>], iteration_bounds = array<i64: 2, 1, 2>, scalar_prefetch = 0 : i64, scratch_operands = 1 : i64, tpu.core_type = #tpu.core_type<tc>, window_params = [{transform_indices = @transform_0, window_bounds = array<i64: 48, 512>}, {transform_indices = @transform_1, window_bounds = array<i64: 256, 512>}, {transform_indices = @transform_2, window_bounds = array<i64: 1, 256>}, {transform_indices = @transform_3, window_bounds = array<i64: 48, 256>}]} {
    %c0_i32 = arith.constant 0 : i32
    %0 = arith.cmpi eq, %arg2, %c0_i32 : i32
    %1 = arith.extui %0 : i1 to i32
    %c0_i32_0 = arith.constant 0 : i32
    %2 = arith.cmpi ne, %1, %c0_i32_0 : i32
    scf.if %2 {
      %cst_9 = arith.constant 0.000000e+00 : f32
      %12 = vector.broadcast %cst_9 : f32 to vector<48x256xf32>
      %c0_10 = arith.constant 0 : index
      %c0_11 = arith.constant 0 : index
      %13 = vector.load %arg7[%c0_10, %c0_11] : memref<48x256xf32, #tpu.memory_space<vmem>>, vector<48x256xf32>
      tpu.vector_store %arg7[%c0_10, %c0_11], %12 {strides = array<i32>} : memref<48x256xf32, #tpu.memory_space<vmem>>, vector<48x256xf32>,
    } else {
    }
    %c0 = arith.constant 0 : index
    %c0_1 = arith.constant 0 : index
    %3 = vector.load %arg7[%c0, %c0_1] : memref<48x256xf32, #tpu.memory_space<vmem>>, vector<48x256xf32>
    %c0_2 = arith.constant 0 : index
    %c0_3 = arith.constant 0 : index
    %4 = vector.load %arg3[%c0_2, %c0_3] : memref<48x512xf32, #tpu.memory_space<vmem>>, vector<48x512xf32>
    %c0_4 = arith.constant 0 : index
    %c0_5 = arith.constant 0 : index
    %5 = vector.load %arg4[%c0_4, %c0_5] : memref<256x512xf32, #tpu.memory_space<vmem>>, vector<256x512xf32>
    %cst = arith.constant dense<0.000000e+00> : vector<48x256xf32>
    %6 = tpu.matmul %4, %5, %cst {dimension_numbers = #tpu.dot_dimension_numbers<[1], [1], [0], [0], [0, 0, 1, 0], [], []>} : vector<48x512xf32>, vector<256x512xf32>, vector<48x256xf32> -> vector<48x256xf32>
    %7 = arith.addf %3, %6 : vector<48x256xf32>
    %c0_6 = arith.constant 0 : index
    %c0_7 = arith.constant 0 : index
    %8 = vector.load %arg7[%c0_6, %c0_7] : memref<48x256xf32, #tpu.memory_space<vmem>>, vector<48x256xf32>
    tpu.vector_store %arg7[%c0_6, %c0_7], %7 {strides = array<i32>} : memref<48x256xf32, #tpu.memory_space<vmem>>, vector<48x256xf32>,
    %c1_i32 = arith.constant 1 : i32
    %9 = arith.cmpi eq, %arg2, %c1_i32 : i32
    %10 = arith.extui %9 : i1 to i32
    %c0_i32_8 = arith.constant 0 : i32
    %11 = arith.cmpi ne, %10, %c0_i32_8 : i32
    scf.if %11 {
      %c0_9 = arith.constant 0 : index
      %c0_10 = arith.constant 0 : index
      %12 = vector.load %arg7[%c0_9, %c0_10] : memref<48x256xf32, #tpu.memory_space<vmem>>, vector<48x256xf32>
      %c0_11 = arith.constant 0 : index
      %c0_12 = arith.constant 0 : index
      %13 = vector.load %arg5[%c0_11, %c0_12] : memref<1x256xf32, #tpu.memory_space<vmem>>, vector<1x256xf32>
      %14 = vector.broadcast %13 : vector<1x256xf32> to vector<48x256xf32>
      %15 = arith.addf %12, %14 : vector<48x256xf32>
      %c0_13 = arith.constant 0 : index
      %c0_14 = arith.constant 0 : index
      %16 = vector.load %arg6[%c0_13, %c0_14] : memref<48x256xf32, #tpu.memory_space<vmem>>, vector<48x256xf32>
      tpu.vector_store %arg6[%c0_13, %c0_14], %15 {strides = array<i32>} : memref<48x256xf32, #tpu.memory_space<vmem>>, vector<48x256xf32>,
    } else {
    }
    return
  }
  func.func @transform_0(%arg0: i32, %arg1: i32, %arg2: i32) -> (i32, i32) {
    %c0_i32 = arith.constant 0 : i32
    return %arg1, %arg2 : i32, i32
  }
  func.func @transform_1(%arg0: i32, %arg1: i32, %arg2: i32) -> (i32, i32) {
    %c0_i32 = arith.constant 0 : i32
    return %arg0, %arg2 : i32, i32
  }
  func.func @transform_2(%arg0: i32, %arg1: i32, %arg2: i32) -> (i32, i32) {
    %c0_i32 = arith.constant 0 : i32
    %c0_i32_0 = arith.constant 0 : i32
    return %c0_i32, %arg0 : i32, i32
  }
  func.func @transform_3(%arg0: i32, %arg1: i32, %arg2: i32) -> (i32, i32) {
    %c0_i32 = arith.constant 0 : i32
    return %arg1, %arg0 : i32, i32
  }
}

</mosaic_0001>

<llo_original>
// kernel: tpu_custom_call.1
$region0: #{tpu_custom_call.1}
  #allocation0 [shape = 'u32[]', space=smem, size = 0x4, offset = 0x4, fixed_abs, tag = 'smem constant byte address 0x4 - core index']
  #allocation1 [shape = 'u32[144,128]{1,0:T(1,128)}', space=vmem, size = 0x12000, scoped, tag = 'internal scratch']
  #allocation2 [shape = 'f32[48,256]{1,0:T(8,128)}', space=vmem, size = 0xc000, scoped, tag = 'scratch operand']
  %s0 = inlined_call_operand.hbm [shape: f32[48,1024], index: 0, kind: input, shape index: {}]
  %s1 = inlined_call_operand.hbm [shape: f32[512,1024], index: 1, kind: input, shape index: {}]
  %s2 = inlined_call_operand.hbm [shape: f32[1,512], index: 2, kind: input, shape index: {}]
  %s3 = inlined_call_operand.hbm [shape: f32[48,512], index: 3, kind: output, shape index: {}]
  %s4 = sld [smem:[#allocation0]]
  $region65: #{tpu_custom_call.1} parent=0
    _
  %s6 = ssub.s32 1, %s4
  %s7 = scalar_select 0, %s6, %s4
  $region1: #{tpu_custom_call.1} parent=0
    #allocation3 [shape = 'u8[196608]{0}', space=vmem, size = 0x30000, scoped, tag = 'input window, operand 0']
    #allocation4 [shape = 's32[2]{0}', space=sflag, size = 0x8, scoped, tag = 'scoped memory for tpu_custom_call.1']
    #allocation5 [shape = 's32[2]{0}', space=sflag, size = 0x8, scoped, tag = 'scoped memory for tpu_custom_call.1']
    #allocation6 [shape = 'u8[1048576]{0}', space=vmem, size = 0x100000, scoped, tag = 'input window, operand 1']
    #allocation7 [shape = 's32[2]{0}', space=sflag, size = 0x8, scoped, tag = 'scoped memory for tpu_custom_call.1']
    #allocation8 [shape = 'u8[2048]{0}', space=vmem, size = 0x800, scoped, tag = 'input window, operand 2']
    #allocation9 [shape = 'u8[98304]{0}', space=vmem, size = 0x18000, scoped, tag = 'output window, operand 0']
    %8 = vsyncpa [#allocation4], 0
    %s9 = scalar_lea.sflag [#allocation4], 1
    %10 = vsyncpa %s9, 0
    %11 = vsyncpa [#allocation7], 0
    %s12 = scalar_lea.sflag [#allocation7], 1
    %13 = vsyncpa %s12, 0
    %14 = vsyncpa [#allocation5], 0
    %s15 = scalar_lea.sflag [#allocation5], 1
    %16 = vsyncpa %s15, 0
    loop: start=0, step=1, limit=6
    $region2: #{tpu_custom_call.1} parent=1 // loop_pre_header
      _
    $region3: #{tpu_custom_call.1} parent=1 // loop_header
      %s18 = sphi 0, %s22
      %p19 = scmp.ge.s32.totalorder %s18, 6
      %s25 = sphi 0, %s44
      %s26 = sphi 0, %s40
      %s27 = sphi 0, %s36
      %s28 = sphi 0, %s25
      %s29 = sphi 0, %s26
      %s30 = sphi 0, %s27
      %s31 = sphi 0, %s28
      %s32 = sphi 0, %s29
      %s33 = sphi 0, %s30
      %s49 = sphi 0, %s51
      %s52 = sphi 0, %s49
      %s53 = sphi 0, %s52
      %s69 = sphi 0, %s53
      %s77 = sphi 0, %s79
      %s80 = sphi 0, %s77
      %s81 = sphi 0, %s80
      %s97 = sphi 0, %s81
      %s103 = sphi 0, %s105
      %s106 = sphi 0, %s103
      %s107 = sphi 0, %s106
      %s123 = sphi 0, %s107
      %s131 = sphi 0, %s133
      %s134 = sphi 0, %s131
      %s135 = sphi 0, %s134
      %s151 = sphi 0, %s135
    $region4: #{tpu_custom_call.1} parent=1 // loop_header_branch
      %21 = sbr.rel (%p19) target = $region8
    $region5: #{tpu_custom_call.1} parent=1 // loop_body
      %s23 = ssub.s32 %s18, 1
      %s24 = ssub.s32 %s18, 2
      %s34 = sadd.s32 1, %s27
      %p35 = scmp.ge.s32.totalorder %s34, 2
      %s36 = scalar_select %p35, 0, %s34
      %s37 = sadd.s32 1, %s26
      %s38 = scalar_select %p35, %s37, %s26
      %p39 = scmp.ge.s32.totalorder %s38, 1
      %s40 = scalar_select %p39, 0, %s38
      %s41 = sadd.s32 1, %s25
      %s42 = scalar_select %p39, %s41, %s25
      %p43 = scmp.ge.s32.totalorder %s42, 2
      %s44 = scalar_select %p43, 0, %s42
      %s45 = ssub.s32 %s26, %s40
      %s46 = ssub.s32 %s27, %s36
      %s47 = sor.u32 %s45, %s46
      %p48 = scmp.eq.s32.totalorder %s47, 0
      %s50 = sadd.s32 %s49, 1
      %s51 = scalar_select %p48, %s49, %s50
      %p54 = pneg %p48
      %p55 = scmp.eq.s32.totalorder %s18, 3
      %p56 = por %p54, %p55
      %p57 = scmp.ne.s32.totalorder %s49, %s52
      %p58 = scmp.eq.s32.totalorder %s18, 0
      %p59 = por %p57, %p58
      %p60 = scmp.ne.s32.totalorder %s49, %s52
      %p61 = scmp.eq.s32.totalorder %s23, 3
      %p62 = por %p60, %p61
      %p63 = scmp.ne.s32.totalorder %s52, %s53
      %p64 = scmp.eq.s32.totalorder %s23, 0
      %p65 = por %p63, %p64
      %p66 = scmp.ne.s32.totalorder %s52, %s53
      %p67 = scmp.eq.s32.totalorder %s24, 3
      %p68 = por %p66, %p67
      %p70 = scmp.ne.s32.totalorder %s53, %s69
      %p71 = scmp.eq.s32.totalorder %s24, 0
      %p72 = por %p70, %p71
      %s73 = ssub.s32 %s25, %s44
      %s74 = ssub.s32 %s27, %s36
      %s75 = sor.u32 %s73, %s74
      %p76 = scmp.eq.s32.totalorder %s75, 0
      %s78 = sadd.s32 %s77, 1
      %s79 = scalar_select %p76, %s77, %s78
      %p82 = pneg %p76
      %p83 = scmp.eq.s32.totalorder %s18, 3
      %p84 = por %p82, %p83
      %p85 = scmp.ne.s32.totalorder %s77, %s80
      %p86 = scmp.eq.s32.totalorder %s18, 0
      %p87 = por %p85, %p86
      %p88 = scmp.ne.s32.totalorder %s77, %s80
      %p89 = scmp.eq.s32.totalorder %s23, 3
      %p90 = por %p88, %p89
      %p91 = scmp.ne.s32.totalorder %s80, %s81
      %p92 = scmp.eq.s32.totalorder %s23, 0
      %p93 = por %p91, %p92
      %p94 = scmp.ne.s32.totalorder %s80, %s81
      %p95 = scmp.eq.s32.totalorder %s24, 3
      %p96 = por %p94, %p95
      %p98 = scmp.ne.s32.totalorder %s81, %s97
      %p99 = scmp.eq.s32.totalorder %s24, 0
      %p100 = por %p98, %p99
      %s101 = ssub.s32 %s25, %s44
      %p102 = scmp.eq.s32.totalorder %s101, 0
      %s104 = sadd.s32 %s103, 1
      %s105 = scalar_select %p102, %s103, %s104
      %p108 = pneg %p102
      %p109 = scmp.eq.s32.totalorder %s18, 3
      %p110 = por %p108, %p109
      %p111 = scmp.ne.s32.totalorder %s103, %s106
      %p112 = scmp.eq.s32.totalorder %s18, 0
      %p113 = por %p111, %p112
      %p114 = scmp.ne.s32.totalorder %s103, %s106
      %p115 = scmp.eq.s32.totalorder %s23, 3
      %p116 = por %p114, %p115
      %p117 = scmp.ne.s32.totalorder %s106, %s107
      %p118 = scmp.eq.s32.totalorder %s23, 0
      %p119 = por %p117, %p118
      %p120 = scmp.ne.s32.totalorder %s106, %s107
      %p121 = scmp.eq.s32.totalorder %s24, 3
      %p122 = por %p120, %p121
      %p124 = scmp.ne.s32.totalorder %s107, %s123
      %p125 = scmp.eq.s32.totalorder %s24, 0
      %p126 = por %p124, %p125
      %s127 = ssub.s32 %s26, %s40
      %s128 = ssub.s32 %s25, %s44
      %s129 = sor.u32 %s127, %s128
      %p130 = scmp.eq.s32.totalorder %s129, 0
      %s132 = sadd.s32 %s131, 1
      %s133 = scalar_select %p130, %s131, %s132
      %p136 = pneg %p130
      %p137 = scmp.eq.s32.totalorder %s18, 3
      %p138 = por %p136, %p137
      %p139 = scmp.ne.s32.totalorder %s131, %s134
      %p140 = scmp.eq.s32.totalorder %s18, 0
      %p141 = por %p139, %p140
      %p142 = scmp.ne.s32.totalorder %s131, %s134
      %p143 = scmp.eq.s32.totalorder %s23, 3
      %p144 = por %p142, %p143
      %p145 = scmp.ne.s32.totalorder %s134, %s135
      %p146 = scmp.eq.s32.totalorder %s23, 0
      %p147 = por %p145, %p146
      %p148 = scmp.ne.s32.totalorder %s134, %s135
      %p149 = scmp.eq.s32.totalorder %s24, 3
      %p150 = por %p148, %p149
      %p152 = scmp.ne.s32.totalorder %s135, %s151
      %p153 = scmp.eq.s32.totalorder %s24, 0
      %p154 = por %p152, %p153
      %p155 = scmp.le.s32.totalorder 1, %s18
      %p156 = scmp.lt.s32.totalorder %s18, 5
      %p157 = pnand %p155, %p156
      %p158 = pneg %p157
      // Predicated region
      $region9: #{tpu_custom_call.1} parent=5 // pred_check
        _
      $region10: #{tpu_custom_call.1} parent=5 // pred_check_branch
        %160 = sbr.rel (%p157) target = $region12
      $region11: #{tpu_custom_call.1} parent=5 // pred_region
        %s161 = ssub.s32 %s18, 1
      $region12: #{tpu_custom_call.1} parent=5 // pred_fallthru
        _
      %p162 = scmp.lt.s32.totalorder %s18, 4
      // Predicated region
      $region13: #{tpu_custom_call.1} parent=5 // pred_check
        %p163 = pneg %p162
      $region14: #{tpu_custom_call.1} parent=5 // pred_check_branch
        %165 = sbr.rel (%p163) target = $region16
      $region15: #{tpu_custom_call.1} parent=5 // pred_region
        // Predicated region
        $region17: #{tpu_custom_call.1} parent=15 // pred_check
          %p166 = pneg %p59
        $region18: #{tpu_custom_call.1} parent=15 // pred_check_branch
          %168 = sbr.rel (%p166) target = $region20
        $region19: #{tpu_custom_call.1} parent=15 // pred_region
          %s169 = sand.u32 %s49, 1
          %s170 = scalar_lea.sflag [#allocation4], %s169
          %s171 = sand.u32 %s49, 1
          %s172 = smul.addr %s171, 192
          %s173 = scalar_lea.vmem [#allocation3], %s172
          %s174 = smul.u32 6, %s26
          %s175 = smul.u32 4, %s27
          %s177 = ssub.s32 3072, 3072
          %178 = vsyncadd %s170, %s177
          %s179 = smul.addr %s174, 8
          %s180 = sadd.s32 %s175, %s179
          %s181 = smul.addr %s180, 128
          %s182 = scalar_lea.hbm %s0, %s181
          %s183 = sshll.u32 %s173, 4
          %s184 = int_to_ptr.vmem [resolvable:$true] %s183
          %189 = dma.hbm_to_vmem [thread:$0]  %s182, 3072, %s184, %s170, 1024, 512, 32
        $region20: #{tpu_custom_call.1} parent=15 // pred_fallthru
          _
        // Predicated region
        $region21: #{tpu_custom_call.1} parent=15 // pred_check
          %p190 = pneg %p87
        $region22: #{tpu_custom_call.1} parent=15 // pred_check_branch
          %192 = sbr.rel (%p190) target = $region24
        $region23: #{tpu_custom_call.1} parent=15 // pred_region
          %s193 = sand.u32 %s18, 1
          %s194 = scalar_lea.sflag [#allocation7], %s193
          %s195 = sand.u32 %s77, 1
          %s196 = smul.addr %s195, 1024
          %s197 = scalar_lea.vmem [#allocation6], %s196
          %s198 = smul.u32 32, %s25
          %s199 = smul.u32 4, %s27
          %s201 = ssub.s32 16384, 16384
          %202 = vsyncadd %s194, %s201
          %s203 = smul.addr %s198, 8
          %s204 = sadd.s32 %s199, %s203
          %s205 = smul.addr %s204, 128
          %s206 = scalar_lea.hbm %s1, %s205
          %s207 = sshll.u32 %s197, 4
          %s208 = int_to_ptr.vmem [resolvable:$true] %s207
          %213 = dma.hbm_to_vmem [thread:$0]  %s206, 16384, %s208, %s194, 1024, 512, 32
        $region24: #{tpu_custom_call.1} parent=15 // pred_fallthru
          _
        // Predicated region
        $region25: #{tpu_custom_call.1} parent=15 // pred_check
          %p214 = pneg %p113
        $region26: #{tpu_custom_call.1} parent=15 // pred_check_branch
          %216 = sbr.rel (%p214) target = $region28
        $region27: #{tpu_custom_call.1} parent=15 // pred_region
          %s217 = sand.u32 %s18, 1
          %s218 = scalar_lea.sflag [#allocation7], %s217
          %s219 = sand.u32 %s103, 1
          %s220 = smul.addr %s219, 2
          %s221 = scalar_lea.vmem [#allocation8], %s220
          %s222 = smul.u32 2, %s25
          %s224 = ssub.s32 32, 32
          %225 = vsyncadd %s218, %s224
          %s226 = smul.addr %s222, 16
          %s227 = scalar_lea.hbm %s2, %s226
          %s229 = sshll.u32 %s221, 4
          %s230 = int_to_ptr.vmem [resolvable:$true] %s229
          %232 = dma.hbm_to_vmem [thread:$0]  %s227, 32, %s230, %s218
        $region28: #{tpu_custom_call.1} parent=15 // pred_fallthru
          _
      $region16: #{tpu_custom_call.1} parent=5 // pred_fallthru
        _
      %p233 = scmp.le.s32.totalorder 1, %s18
      %p234 = scmp.lt.s32.totalorder %s18, 5
      %p235 = pnand %p233, %p234
      %p236 = pneg %p235
      // Predicated region
      $region29: #{tpu_custom_call.1} parent=5 // pred_check
        _
      $region30: #{tpu_custom_call.1} parent=5 // pred_check_branch
        %238 = sbr.rel (%p235) target = $region32
      $region31: #{tpu_custom_call.1} parent=5 // pred_region
        %s239 = ssub.s32 %s18, 1
        %s240 = sand.u32 %s52, 1
        %s241 = scalar_lea.sflag [#allocation4], %s240
        %s242 = sand.u32 %s52, 1
        %s243 = smul.addr %s242, 192
        %s244 = scalar_lea.vmem [#allocation3], %s243
        // Predicated region
        $region33: #{tpu_custom_call.1} parent=31 // pred_check
          %p245 = pneg %p65
        $region34: #{tpu_custom_call.1} parent=31 // pred_check_branch
          %247 = sbr.rel (%p245) target = $region36
        $region35: #{tpu_custom_call.1} parent=31 // pred_region
          %248 = dma.done %s241, 3072
        $region36: #{tpu_custom_call.1} parent=31 // pred_fallthru
          _
        %s249 = sand.u32 %s23, 1
        %s250 = scalar_lea.sflag [#allocation7], %s249
        %s251 = sand.u32 %s80, 1
        %s252 = smul.addr %s251, 1024
        %s253 = scalar_lea.vmem [#allocation6], %s252
        // Predicated region
        $region37: #{tpu_custom_call.1} parent=31 // pred_check
          %p254 = pneg %p93
        $region38: #{tpu_custom_call.1} parent=31 // pred_check_branch
          %256 = sbr.rel (%p254) target = $region40
        $region39: #{tpu_custom_call.1} parent=31 // pred_region
          %257 = dma.done %s250, 16384
        $region40: #{tpu_custom_call.1} parent=31 // pred_fallthru
          _
        %s258 = sand.u32 %s23, 1
        %s259 = scalar_lea.sflag [#allocation7], %s258
        %s260 = sand.u32 %s106, 1
        %s261 = smul.addr %s260, 2
        %s262 = scalar_lea.vmem [#allocation8], %s261
        // Predicated region
        $region41: #{tpu_custom_call.1} parent=31 // pred_check
          %p263 = pneg %p119
        $region42: #{tpu_custom_call.1} parent=31 // pred_check_branch
          %265 = sbr.rel (%p263) target = $region44
        $region43: #{tpu_custom_call.1} parent=31 // pred_region
          %266 = dma.done %s259, 32
        $region44: #{tpu_custom_call.1} parent=31 // pred_fallthru
          _
        %s267 = sand.u32 %s52, 1
        %s268 = scalar_lea.sflag [#allocation4], %s267
        %s269 = sand.u32 %s52, 1
        %s270 = smul.addr %s269, 192
        %s271 = scalar_lea.vmem [#allocation3], %s270
        %p272 = pneg %p65
        %p273 = pneg %p62
        %s274 = sand.u32 %s23, 1
        %s275 = scalar_lea.sflag [#allocation7], %s274
        %s276 = sand.u32 %s80, 1
        %s277 = smul.addr %s276, 1024
        %s278 = scalar_lea.vmem [#allocation6], %s277
        %p279 = pneg %p93
        %p280 = pneg %p90
        %s281 = sand.u32 %s23, 1
        %s282 = scalar_lea.sflag [#allocation7], %s281
        %s283 = sand.u32 %s106, 1
        %s284 = smul.addr %s283, 2
        %s285 = scalar_lea.vmem [#allocation8], %s284
        %p286 = pneg %p119
        %p287 = pneg %p116
        %p288 = pneg %p147
        %p289 = pneg %p144
        %s290 = sand.u32 %s134, 1
        %s291 = scalar_lea.sflag [#allocation5], %s290
        %s292 = sand.u32 %s134, 1
        %s293 = smul.addr %s292, 96
        %s294 = scalar_lea.vmem [#allocation9], %s293
        %s295 = smul.u32 6, %s29
        %s296 = smul.u32 4, %s30
        %s297 = smul.u32 32, %s28
        %s298 = smul.u32 4, %s30
        %s299 = smul.u32 2, %s28
        %s300 = smul.u32 6, %s29
        %s301 = smul.u32 2, %s28
        %p302 = scmp.eq.s32.totalorder %s30, 0
        // Predicated region
        $region45: #{tpu_custom_call.1} parent=31 // pred_check
          %p303 = pneg %p302
        $region46: #{tpu_custom_call.1} parent=31 // pred_check_branch
          %305 = sbr.rel (%p303) target = $region48
        $region47: #{tpu_custom_call.1} parent=31 // pred_region
          %306 = vst [vmem:[#allocation2] sm:$0xff] 0.0
          %307 = vst [vmem:[#allocation2 + $0x8] sm:$0xff] 0.0
          %308 = vst [vmem:[#allocation2 + $0x10] sm:$0xff] 0.0
          %309 = vst [vmem:[#allocation2 + $0x18] sm:$0xff] 0.0
          %310 = vst [vmem:[#allocation2 + $0x20] sm:$0xff] 0.0
          %311 = vst [vmem:[#allocation2 + $0x28] sm:$0xff] 0.0
          %312 = vst [vmem:[#allocation2 + $0x30] sm:$0xff] 0.0
          %313 = vst [vmem:[#allocation2 + $0x38] sm:$0xff] 0.0
          %314 = vst [vmem:[#allocation2 + $0x40] sm:$0xff] 0.0
          %315 = vst [vmem:[#allocation2 + $0x48] sm:$0xff] 0.0
          %316 = vst [vmem:[#allocation2 + $0x50] sm:$0xff] 0.0
          %317 = vst [vmem:[#allocation2 + $0x58] sm:$0xff] 0.0
        $region48: #{tpu_custom_call.1} parent=31 // pred_fallthru
          _
        %v318 = vld [vmem:[#allocation2] sm:$0xff]
        %v319 = vld [vmem:[#allocation2 + $0x8] sm:$0xff]
        %v320 = vld [vmem:[#allocation2 + $0x10] sm:$0xff]
        %v321 = vld [vmem:[#allocation2 + $0x18] sm:$0xff]
        %v322 = vld [vmem:[#allocation2 + $0x20] sm:$0xff]
        %v323 = vld [vmem:[#allocation2 + $0x28] sm:$0xff]
        %v324 = vld [vmem:[#allocation2 + $0x30] sm:$0xff]
        %v325 = vld [vmem:[#allocation2 + $0x38] sm:$0xff]
        %v326 = vld [vmem:[#allocation2 + $0x40] sm:$0xff]
        %v327 = vld [vmem:[#allocation2 + $0x48] sm:$0xff]
        %v328 = vld [vmem:[#allocation2 + $0x50] sm:$0xff]
        %v329 = vld [vmem:[#allocation2 + $0x58] sm:$0xff]
        %v330 = vld [vmem:[%s244] sm:$0xff]
        %v331 = vld [vmem:[%s244 + $0x8] sm:$0xff]
        %v332 = vld [vmem:[%s244 + $0x10] sm:$0xff]
        %v333 = vld [vmem:[%s244 + $0x18] sm:$0xff]
        %v334 = vld [vmem:[%s244 + $0x20] sm:$0xff]
        %v335 = vld [vmem:[%s244 + $0x28] sm:$0xff]
        %v336 = vld [vmem:[%s244 + $0x30] sm:$0xff]
        %v337 = vld [vmem:[%s244 + $0x38] sm:$0xff]
        %v338 = vld [vmem:[%s244 + $0x40] sm:$0xff]
        %v339 = vld [vmem:[%s244 + $0x48] sm:$0xff]
        %v340 = vld [vmem:[%s244 + $0x50] sm:$0xff]
        %v341 = vld [vmem:[%s244 + $0x58] sm:$0xff]
        %v342 = vld [vmem:[%s244 + $0x60] sm:$0xff]
        %v343 = vld [vmem:[%s244 + $0x68] sm:$0xff]
        %v344 = vld [vmem:[%s244 + $0x70] sm:$0xff]
        %v345 = vld [vmem:[%s244 + $0x78] sm:$0xff]
        %v346 = vld [vmem:[%s244 + $0x80] sm:$0xff]
        %v347 = vld [vmem:[%s244 + $0x88] sm:$0xff]
        %v348 = vld [vmem:[%s244 + $0x90] sm:$0xff]
        %v349 = vld [vmem:[%s244 + $0x98] sm:$0xff]
        %v350 = vld [vmem:[%s244 + $0xa0] sm:$0xff]
        %v351 = vld [vmem:[%s244 + $0xa8] sm:$0xff]
        %v352 = vld [vmem:[%s244 + $0xb0] sm:$0xff]
        %v353 = vld [vmem:[%s244 + $0xb8] sm:$0xff]
        %v354 = vld [vmem:[%s253] sm:$0xff]
        %v355 = vld [vmem:[%s253 + $0x8] sm:$0xff]
        %v356 = vld [vmem:[%s253 + $0x10] sm:$0xff]
        %v357 = vld [vmem:[%s253 + $0x18] sm:$0xff]
        %v358 = vld [vmem:[%s253 + $0x20] sm:$0xff]
        %v359 = vld [vmem:[%s253 + $0x28] sm:$0xff]
        %v360 = vld [vmem:[%s253 + $0x30] sm:$0xff]
        %v361 = vld [vmem:[%s253 + $0x38] sm:$0xff]
        %v362 = vld [vmem:[%s253 + $0x40] sm:$0xff]
        %v363 = vld [vmem:[%s253 + $0x48] sm:$0xff]
        %v364 = vld [vmem:[%s253 + $0x50] sm:$0xff]
        %v365 = vld [vmem:[%s253 + $0x58] sm:$0xff]
        %v366 = vld [vmem:[%s253 + $0x60] sm:$0xff]
        %v367 = vld [vmem:[%s253 + $0x68] sm:$0xff]
        %v368 = vld [vmem:[%s253 + $0x70] sm:$0xff]
        %v369 = vld [vmem:[%s253 + $0x78] sm:$0xff]
        %v370 = vld [vmem:[%s253 + $0x80] sm:$0xff]
        %v371 = vld [vmem:[%s253 + $0x88] sm:$0xff]
        %v372 = vld [vmem:[%s253 + $0x90] sm:$0xff]
        %v373 = vld [vmem:[%s253 + $0x98] sm:$0xff]
        %v374 = vld [vmem:[%s253 + $0xa0] sm:$0xff]
        %v375 = vld [vmem:[%s253 + $0xa8] sm:$0xff]
        %v376 = vld [vmem:[%s253 + $0xb0] sm:$0xff]
        %v377 = vld [vmem:[%s253 + $0xb8] sm:$0xff]
        %v378 = vld [vmem:[%s253 + $0xc0] sm:$0xff]
        %v379 = vld [vmem:[%s253 + $0xc8] sm:$0xff]
        %v380 = vld [vmem:[%s253 + $0xd0] sm:$0xff]
        %v381 = vld [vmem:[%s253 + $0xd8] sm:$0xff]
        %v382 = vld [vmem:[%s253 + $0xe0] sm:$0xff]
        %v383 = vld [vmem:[%s253 + $0xe8] sm:$0xff]
        %v384 = vld [vmem:[%s253 + $0xf0] sm:$0xff]
        %v385 = vld [vmem:[%s253 + $0xf8] sm:$0xff]
        %v386 = vld [vmem:[%s253 + $0x100] sm:$0xff]
        %v387 = vld [vmem:[%s253 + $0x108] sm:$0xff]
        %v388 = vld [vmem:[%s253 + $0x110] sm:$0xff]
        %v389 = vld [vmem:[%s253 + $0x118] sm:$0xff]
        %v390 = vld [vmem:[%s253 + $0x120] sm:$0xff]
        %v391 = vld [vmem:[%s253 + $0x128] sm:$0xff]
        %v392 = vld [vmem:[%s253 + $0x130] sm:$0xff]
        %v393 = vld [vmem:[%s253 + $0x138] sm:$0xff]
        %v394 = vld [vmem:[%s253 + $0x140] sm:$0xff]
        %v395 = vld [vmem:[%s253 + $0x148] sm:$0xff]
        %v396 = vld [vmem:[%s253 + $0x150] sm:$0xff]
        %v397 = vld [vmem:[%s253 + $0x158] sm:$0xff]
        %v398 = vld [vmem:[%s253 + $0x160] sm:$0xff]
        %v399 = vld [vmem:[%s253 + $0x168] sm:$0xff]
        %v400 = vld [vmem:[%s253 + $0x170] sm:$0xff]
        %v401 = vld [vmem:[%s253 + $0x178] sm:$0xff]
        %v402 = vld [vmem:[%s253 + $0x180] sm:$0xff]
        %v403 = vld [vmem:[%s253 + $0x188] sm:$0xff]
        %v404 = vld [vmem:[%s253 + $0x190] sm:$0xff]
        %v405 = vld [vmem:[%s253 + $0x198] sm:$0xff]
        %v406 = vld [vmem:[%s253 + $0x1a0] sm:$0xff]
        %v407 = vld [vmem:[%s253 + $0x1a8] sm:$0xff]
        %v408 = vld [vmem:[%s253 + $0x1b0] sm:$0xff]
        %v409 = vld [vmem:[%s253 + $0x1b8] sm:$0xff]
        %v410 = vld [vmem:[%s253 + $0x1c0] sm:$0xff]
        %v411 = vld [vmem:[%s253 + $0x1c8] sm:$0xff]
        %v412 = vld [vmem:[%s253 + $0x1d0] sm:$0xff]
        %v413 = vld [vmem:[%s253 + $0x1d8] sm:$0xff]
        %v414 = vld [vmem:[%s253 + $0x1e0] sm:$0xff]
        %v415 = vld [vmem:[%s253 + $0x1e8] sm:$0xff]
        %v416 = vld [vmem:[%s253 + $0x1f0] sm:$0xff]
        %v417 = vld [vmem:[%s253 + $0x1f8] sm:$0xff]
        %v418 = vld [vmem:[%s253 + $0x200] sm:$0xff]
        %v419 = vld [vmem:[%s253 + $0x208] sm:$0xff]
        %v420 = vld [vmem:[%s253 + $0x210] sm:$0xff]
        %v421 = vld [vmem:[%s253 + $0x218] sm:$0xff]
        %v422 = vld [vmem:[%s253 + $0x220] sm:$0xff]
        %v423 = vld [vmem:[%s253 + $0x228] sm:$0xff]
        %v424 = vld [vmem:[%s253 + $0x230] sm:$0xff]
        %v425 = vld [vmem:[%s253 + $0x238] sm:$0xff]
        %v426 = vld [vmem:[%s253 + $0x240] sm:$0xff]
        %v427 = vld [vmem:[%s253 + $0x248] sm:$0xff]
        %v428 = vld [vmem:[%s253 + $0x250] sm:$0xff]
        %v429 = vld [vmem:[%s253 + $0x258] sm:$0xff]
        %v430 = vld [vmem:[%s253 + $0x260] sm:$0xff]
        %v431 = vld [vmem:[%s253 + $0x268] sm:$0xff]
        %v432 = vld [vmem:[%s253 + $0x270] sm:$0xff]
        %v433 = vld [vmem:[%s253 + $0x278] sm:$0xff]
        %v434 = vld [vmem:[%s253 + $0x280] sm:$0xff]
        %v435 = vld [vmem:[%s253 + $0x288] sm:$0xff]
        %v436 = vld [vmem:[%s253 + $0x290] sm:$0xff]
        %v437 = vld [vmem:[%s253 + $0x298] sm:$0xff]
        %v438 = vld [vmem:[%s253 + $0x2a0] sm:$0xff]
        %v439 = vld [vmem:[%s253 + $0x2a8] sm:$0xff]
        %v440 = vld [vmem:[%s253 + $0x2b0] sm:$0xff]
        %v441 = vld [vmem:[%s253 + $0x2b8] sm:$0xff]
        %v442 = vld [vmem:[%s253 + $0x2c0] sm:$0xff]
        %v443 = vld [vmem:[%s253 + $0x2c8] sm:$0xff]
        %v444 = vld [vmem:[%s253 + $0x2d0] sm:$0xff]
        %v445 = vld [vmem:[%s253 + $0x2d8] sm:$0xff]
        %v446 = vld [vmem:[%s253 + $0x2e0] sm:$0xff]
        %v447 = vld [vmem:[%s253 + $0x2e8] sm:$0xff]
        %v448 = vld [vmem:[%s253 + $0x2f0] sm:$0xff]
        %v449 = vld [vmem:[%s253 + $0x2f8] sm:$0xff]
        %v450 = vld [vmem:[%s253 + $0x300] sm:$0xff]
        %v451 = vld [vmem:[%s253 + $0x308] sm:$0xff]
        %v452 = vld [vmem:[%s253 + $0x310] sm:$0xff]
        %v453 = vld [vmem:[%s253 + $0x318] sm:$0xff]
        %v454 = vld [vmem:[%s253 + $0x320] sm:$0xff]
        %v455 = vld [vmem:[%s253 + $0x328] sm:$0xff]
        %v456 = vld [vmem:[%s253 + $0x330] sm:$0xff]
        %v457 = vld [vmem:[%s253 + $0x338] sm:$0xff]
        %v458 = vld [vmem:[%s253 + $0x340] sm:$0xff]
        %v459 = vld [vmem:[%s253 + $0x348] sm:$0xff]
        %v460 = vld [vmem:[%s253 + $0x350] sm:$0xff]
        %v461 = vld [vmem:[%s253 + $0x358] sm:$0xff]
        %v462 = vld [vmem:[%s253 + $0x360] sm:$0xff]
        %v463 = vld [vmem:[%s253 + $0x368] sm:$0xff]
        %v464 = vld [vmem:[%s253 + $0x370] sm:$0xff]
        %v465 = vld [vmem:[%s253 + $0x378] sm:$0xff]
        %v466 = vld [vmem:[%s253 + $0x380] sm:$0xff]
        %v467 = vld [vmem:[%s253 + $0x388] sm:$0xff]
        %v468 = vld [vmem:[%s253 + $0x390] sm:$0xff]
        %v469 = vld [vmem:[%s253 + $0x398] sm:$0xff]
        %v470 = vld [vmem:[%s253 + $0x3a0] sm:$0xff]
        %v471 = vld [vmem:[%s253 + $0x3a8] sm:$0xff]
        %v472 = vld [vmem:[%s253 + $0x3b0] sm:$0xff]
        %v473 = vld [vmem:[%s253 + $0x3b8] sm:$0xff]
        %v474 = vld [vmem:[%s253 + $0x3c0] sm:$0xff]
        %v475 = vld [vmem:[%s253 + $0x3c8] sm:$0xff]
        %v476 = vld [vmem:[%s253 + $0x3d0] sm:$0xff]
        %v477 = vld [vmem:[%s253 + $0x3d8] sm:$0xff]
        %v478 = vld [vmem:[%s253 + $0x3e0] sm:$0xff]
        %v479 = vld [vmem:[%s253 + $0x3e8] sm:$0xff]
        %v480 = vld [vmem:[%s253 + $0x3f0] sm:$0xff]
        %v481 = vld [vmem:[%s253 + $0x3f8] sm:$0xff]
        %482 = vmatprep.subr.mxu0 %v355
        %483 = vmatpush1.xpose.msra.mxu0 %v354
        %484 = vmatprep.subr.mxu0 %v359
        %485 = vmatpush1.xpose.msra.mxu0 %v358
        %486 = vmatprep.subr.mxu0 %v363
        %487 = vmatpush1.xpose.msra.mxu0 %v362
        %488 = vmatprep.subr.mxu0 %v367
        %489 = vmatpush1.xpose.msra.mxu0 %v366
        %490 = vmatprep.subr.mxu0 %v371
        %491 = vmatpush1.xpose.msra.mxu0 %v370
        %492 = vmatprep.subr.mxu0 %v375
        %493 = vmatpush1.xpose.msra.mxu0 %v374
        %494 = vmatprep.subr.mxu0 %v379
        %495 = vmatpush1.xpose.msra.mxu0 %v378
        %496 = vmatprep.subr.mxu0 %v383
        %497 = vmatpush1.xpose.msra.mxu0 %v382
        %498 = vmatprep.subr.mxu0 %v387
        %499 = vmatpush1.xpose.msra.mxu0 %v386
        %500 = vmatprep.subr.mxu0 %v391
        %501 = vmatpush1.xpose.msra.mxu0 %v390
        %502 = vmatprep.subr.mxu0 %v395
        %503 = vmatpush1.xpose.msra.mxu0 %v394
        %504 = vmatprep.subr.mxu0 %v399
        %505 = vmatpush1.xpose.msra.mxu0 %v398
        %506 = vmatprep.subr.mxu0 %v403
        %507 = vmatpush1.xpose.msra.mxu0 %v402
        %508 = vmatprep.subr.mxu0 %v407
        %509 = vmatpush1.xpose.msra.mxu0 %v406
        %510 = vmatprep.subr.mxu0 %v411
        %511 = vmatpush1.xpose.msra.mxu0 %v410
        %512 = vmatprep.subr.mxu0 %v415
        %513 = vmatpush1.xpose.msra.mxu0 %v414
        %514 = vmatprep.subr.mxu0 %v419
        %515 = vmatpush1.xpose.msra.mxu0 %v418
        %516 = vmatprep.subr.mxu0 %v423
        %517 = vmatpush1.xpose.msra.mxu0 %v422
        %518 = vmatprep.subr.mxu0 %v427
        %519 = vmatpush1.xpose.msra.mxu0 %v426
        %520 = vmatprep.subr.mxu0 %v431
        %521 = vmatpush1.xpose.msra.mxu0 %v430
        %522 = vmatprep.subr.mxu0 %v435
        %523 = vmatpush1.xpose.msra.mxu0 %v434
        %524 = vmatprep.subr.mxu0 %v439
        %525 = vmatpush1.xpose.msra.mxu0 %v438
        %526 = vmatprep.subr.mxu0 %v443
        %527 = vmatpush1.xpose.msra.mxu0 %v442
        %528 = vmatprep.subr.mxu0 %v447
        %529 = vmatpush1.xpose.msra.mxu0 %v446
        %530 = vmatprep.subr.mxu0 %v451
        %531 = vmatpush1.xpose.msra.mxu0 %v450
        %532 = vmatprep.subr.mxu0 %v455
        %533 = vmatpush1.xpose.msra.mxu0 %v454
        %534 = vmatprep.subr.mxu0 %v459
        %535 = vmatpush1.xpose.msra.mxu0 %v458
        %536 = vmatprep.subr.mxu0 %v463
        %537 = vmatpush1.xpose.msra.mxu0 %v462
        %538 = vmatprep.subr.mxu0 %v467
        %539 = vmatpush1.xpose.msra.mxu0 %v466
        %540 = vmatprep.subr.mxu0 %v471
        %541 = vmatpush1.xpose.msra.mxu0 %v470
        %542 = vmatprep.subr.mxu0 %v475
        %543 = vmatpush1.xpose.msra.mxu0 %v474
        %544 = vmatprep.subr.mxu0 %v479
        %545 = vmatpush1.xpose.msra.mxu0 %v478
        %546 = vmatprep.mubr.f32.mxu0 %v331
        %547 = vmatmul.mubr.f32.gmra.mrb[0].mxu0 %v330
        %v548 = vpop.f32.mrb[0].mxu0
        %v549 = vadd.f32 0.0, %v548
        %v550 = vpop.f32.mrb[0].mxu0
        %v551 = vadd.f32 0.0, %v550
        %552 = vmatprep.mubr.f32.mxu0 %v335
        %553 = vmatmul.mubr.f32.gmra.mrb[0].mxu0 %v334
        %v554 = vpop.f32.mrb[0].mxu0
        %v555 = vadd.f32 0.0, %v554
        %v556 = vpop.f32.mrb[0].mxu0
        %v557 = vadd.f32 0.0, %v556
        %558 = vmatprep.mubr.f32.mxu0 %v339
        %559 = vmatmul.mubr.f32.gmra.mrb[0].mxu0 %v338
        %v560 = vpop.f32.mrb[0].mxu0
        %v561 = vadd.f32 0.0, %v560
        %v562 = vpop.f32.mrb[0].mxu0
        %v563 = vadd.f32 0.0, %v562
        %564 = vmatprep.mubr.f32.mxu0 %v343
        %565 = vmatmul.mubr.f32.gmra.mrb[0].mxu0 %v342
        %v566 = vpop.f32.mrb[0].mxu0
        %v567 = vadd.f32 0.0, %v566
        %v568 = vpop.f32.mrb[0].mxu0
        %v569 = vadd.f32 0.0, %v568
        %570 = vmatprep.mubr.f32.mxu0 %v347
        %571 = vmatmul.mubr.f32.gmra.mrb[0].mxu0 %v346
        %v572 = vpop.f32.mrb[0].mxu0
        %v573 = vadd.f32 0.0, %v572
        %v574 = vpop.f32.mrb[0].mxu0
        %v575 = vadd.f32 0.0, %v574
        %576 = vmatprep.mubr.f32.mxu0 %v351
        %577 = vmatmul.mubr.f32.gmra.mrb[0].mxu0 %v350
        %v578 = vpop.f32.mrb[0].mxu0
        %v579 = vadd.f32 0.0, %v578
        %v580 = vpop.f32.mrb[0].mxu0
        %v581 = vadd.f32 0.0, %v580
        %582 = vdwg.mxu0
        %583 = vmatprep.subr.mxu0 %v357
        %584 = vmatpush1.xpose.msra.mxu0 %v356
        %585 = vmatprep.subr.mxu0 %v361
        %586 = vmatpush1.xpose.msra.mxu0 %v360
        %587 = vmatprep.subr.mxu0 %v365
        %588 = vmatpush1.xpose.msra.mxu0 %v364
        %589 = vmatprep.subr.mxu0 %v369
        %590 = vmatpush1.xpose.msra.mxu0 %v368
        %591 = vmatprep.subr.mxu0 %v373
        %592 = vmatpush1.xpose.msra.mxu0 %v372
        %593 = vmatprep.subr.mxu0 %v377
        %594 = vmatpush1.xpose.msra.mxu0 %v376
        %595 = vmatprep.subr.mxu0 %v381
        %596 = vmatpush1.xpose.msra.mxu0 %v380
        %597 = vmatprep.subr.mxu0 %v385
        %598 = vmatpush1.xpose.msra.mxu0 %v384
        %599 = vmatprep.subr.mxu0 %v389
        %600 = vmatpush1.xpose.msra.mxu0 %v388
        %601 = vmatprep.subr.mxu0 %v393
        %602 = vmatpush1.xpose.msra.mxu0 %v392
        %603 = vmatprep.subr.mxu0 %v397
        %604 = vmatpush1.xpose.msra.mxu0 %v396
        %605 = vmatprep.subr.mxu0 %v401
        %606 = vmatpush1.xpose.msra.mxu0 %v400
        %607 = vmatprep.subr.mxu0 %v405
        %608 = vmatpush1.xpose.msra.mxu0 %v404
        %609 = vmatprep.subr.mxu0 %v409
        %610 = vmatpush1.xpose.msra.mxu0 %v408
        %611 = vmatprep.subr.mxu0 %v413
        %612 = vmatpush1.xpose.msra.mxu0 %v412
        %613 = vmatprep.subr.mxu0 %v417
        %614 = vmatpush1.xpose.msra.mxu0 %v416
        %615 = vmatprep.subr.mxu0 %v421
        %616 = vmatpush1.xpose.msra.mxu0 %v420
        %617 = vmatprep.subr.mxu0 %v425
        %618 = vmatpush1.xpose.msra.mxu0 %v424
        %619 = vmatprep.subr.mxu0 %v429
        %620 = vmatpush1.xpose.msra.mxu0 %v428
        %621 = vmatprep.subr.mxu0 %v433
        %622 = vmatpush1.xpose.msra.mxu0 %v432
        %623 = vmatprep.subr.mxu0 %v437
        %624 = vmatpush1.xpose.msra.mxu0 %v436
        %625 = vmatprep.subr.mxu0 %v441
        %626 = vmatpush1.xpose.msra.mxu0 %v440
        %627 = vmatprep.subr.mxu0 %v445
        %628 = vmatpush1.xpose.msra.mxu0 %v444
        %629 = vmatprep.subr.mxu0 %v449
        %630 = vmatpush1.xpose.msra.mxu0 %v448
        %631 = vmatprep.subr.mxu0 %v453
        %632 = vmatpush1.xpose.msra.mxu0 %v452
        %633 = vmatprep.subr.mxu0 %v457
        %634 = vmatpush1.xpose.msra.mxu0 %v456
        %635 = vmatprep.subr.mxu0 %v461
        %636 = vmatpush1.xpose.msra.mxu0 %v460
        %637 = vmatprep.subr.mxu0 %v465
        %638 = vmatpush1.xpose.msra.mxu0 %v464
        %639 = vmatprep.subr.mxu0 %v469
        %640 = vmatpush1.xpose.msra.mxu0 %v468
        %641 = vmatprep.subr.mxu0 %v473
        %642 = vmatpush1.xpose.msra.mxu0 %v472
        %643 = vmatprep.subr.mxu0 %v477
        %644 = vmatpush1.xpose.msra.mxu0 %v476
        %645 = vmatprep.subr.mxu0 %v481
        %646 = vmatpush1.xpose.msra.mxu0 %v480
        %647 = vmatprep.mubr.f32.mxu0 %v333
        %648 = vmatmul.mubr.f32.gmra.mrb[0].mxu0 %v332
        %v649 = vpop.f32.mrb[0].mxu0
        %v650 = vadd.f32 %v549, %v649
        %v651 = vpop.f32.mrb[0].mxu0
        %v652 = vadd.f32 %v551, %v651
        %653 = vmatprep.mubr.f32.mxu0 %v337
        %654 = vmatmul.mubr.f32.gmra.mrb[0].mxu0 %v336
        %v655 = vpop.f32.mrb[0].mxu0
        %v656 = vadd.f32 %v555, %v655
        %v657 = vpop.f32.mrb[0].mxu0
        %v658 = vadd.f32 %v557, %v657
        %659 = vmatprep.mubr.f32.mxu0 %v341
        %660 = vmatmul.mubr.f32.gmra.mrb[0].mxu0 %v340
        %v661 = vpop.f32.mrb[0].mxu0
        %v662 = vadd.f32 %v561, %v661
        %v663 = vpop.f32.mrb[0].mxu0
        %v664 = vadd.f32 %v563, %v663
        %665 = vmatprep.mubr.f32.mxu0 %v345
        %666 = vmatmul.mubr.f32.gmra.mrb[0].mxu0 %v344
        %v667 = vpop.f32.mrb[0].mxu0
        %v668 = vadd.f32 %v567, %v667
        %v669 = vpop.f32.mrb[0].mxu0
        %v670 = vadd.f32 %v569, %v669
        %671 = vmatprep.mubr.f32.mxu0 %v349
        %672 = vmatmul.mubr.f32.gmra.mrb[0].mxu0 %v348
        %v673 = vpop.f32.mrb[0].mxu0
        %v674 = vadd.f32 %v573, %v673
        %v675 = vpop.f32.mrb[0].mxu0
        %v676 = vadd.f32 %v575, %v675
        %677 = vmatprep.mubr.f32.mxu0 %v353
        %678 = vmatmul.mubr.f32.gmra.mrb[0].mxu0 %v352
        %v679 = vpop.f32.mrb[0].mxu0
        %v680 = vadd.f32 %v579, %v679
        %v681 = vpop.f32.mrb[0].mxu0
        %v682 = vadd.f32 %v581, %v681
        %683 = vdwg.mxu0
        %v684 = vadd.f32 %v318, %v650
        %v685 = vadd.f32 %v319, %v652
        %v686 = vadd.f32 %v320, %v656
        %v687 = vadd.f32 %v321, %v658
        %v688 = vadd.f32 %v322, %v662
        %v689 = vadd.f32 %v323, %v664
        %v690 = vadd.f32 %v324, %v668
        %v691 = vadd.f32 %v325, %v670
        %v692 = vadd.f32 %v326, %v674
        %v693 = vadd.f32 %v327, %v676
        %v694 = vadd.f32 %v328, %v680
        %v695 = vadd.f32 %v329, %v682
        %696 = vst [vmem:[#allocation2] sm:$0xff] %v684
        %697 = vst [vmem:[#allocation2 + $0x8] sm:$0xff] %v685
        %698 = vst [vmem:[#allocation2 + $0x10] sm:$0xff] %v686
        %699 = vst [vmem:[#allocation2 + $0x18] sm:$0xff] %v687
        %700 = vst [vmem:[#allocation2 + $0x20] sm:$0xff] %v688
        %701 = vst [vmem:[#allocation2 + $0x28] sm:$0xff] %v689
        %702 = vst [vmem:[#allocation2 + $0x30] sm:$0xff] %v690
        %703 = vst [vmem:[#allocation2 + $0x38] sm:$0xff] %v691
        %704 = vst [vmem:[#allocation2 + $0x40] sm:$0xff] %v692
        %705 = vst [vmem:[#allocation2 + $0x48] sm:$0xff] %v693
        %706 = vst [vmem:[#allocation2 + $0x50] sm:$0xff] %v694
        %707 = vst [vmem:[#allocation2 + $0x58] sm:$0xff] %v695
        %p708 = scmp.eq.s32.totalorder %s30, 1
        // Predicated region
        $region49: #{tpu_custom_call.1} parent=31 // pred_check
          %p709 = pneg %p708
        $region50: #{tpu_custom_call.1} parent=31 // pred_check_branch
          %711 = sbr.rel (%p709) target = $region52
        $region51: #{tpu_custom_call.1} parent=31 // pred_region
          %v712 = vld [vmem:[#allocation2] sm:$0xff]
          %v713 = vld [vmem:[#allocation2 + $0x8] sm:$0xff]
          %v714 = vld [vmem:[#allocation2 + $0x10] sm:$0xff]
          %v715 = vld [vmem:[#allocation2 + $0x18] sm:$0xff]
          %v716 = vld [vmem:[#allocation2 + $0x20] sm:$0xff]
          %v717 = vld [vmem:[#allocation2 + $0x28] sm:$0xff]
          %v718 = vld [vmem:[#allocation2 + $0x30] sm:$0xff]
          %v719 = vld [vmem:[#allocation2 + $0x38] sm:$0xff]
          %v720 = vld [vmem:[#allocation2 + $0x40] sm:$0xff]
          %v721 = vld [vmem:[#allocation2 + $0x48] sm:$0xff]
          %v722 = vld [vmem:[#allocation2 + $0x50] sm:$0xff]
          %v723 = vld [vmem:[#allocation2 + $0x58] sm:$0xff]
          %v724 = vld [vmem:[%s262] sm:$0x3]
          %v726 = vlaneseq
          %v727 = vshrl.u32 %v726, 7
          %v728 = vsub.s32 0, %v727
          %v729 = vrot.slane %v724, %v728
          %v730 = vlaneseq
          %v731 = vshrl.u32 %v730, 7
          %v732 = vsub.s32 1, %v731
          %v733 = vrot.slane %v724, %v732
          %v736 = vadd.f32 %v712, %v729
          %v737 = vadd.f32 %v713, %v733
          %v738 = vadd.f32 %v714, %v729
          %v739 = vadd.f32 %v715, %v733
          %v740 = vadd.f32 %v716, %v729
          %v741 = vadd.f32 %v717, %v733
          %v742 = vadd.f32 %v718, %v729
          %v743 = vadd.f32 %v719, %v733
          %v744 = vadd.f32 %v720, %v729
          %v745 = vadd.f32 %v721, %v733
          %v746 = vadd.f32 %v722, %v729
          %v747 = vadd.f32 %v723, %v733
          %748 = vst [vmem:[%s294] sm:$0xff] %v736
          %749 = vst [vmem:[%s294 + $0x8] sm:$0xff] %v737
          %750 = vst [vmem:[%s294 + $0x10] sm:$0xff] %v738
          %751 = vst [vmem:[%s294 + $0x18] sm:$0xff] %v739
          %752 = vst [vmem:[%s294 + $0x20] sm:$0xff] %v740
          %753 = vst [vmem:[%s294 + $0x28] sm:$0xff] %v741
          %754 = vst [vmem:[%s294 + $0x30] sm:$0xff] %v742
          %755 = vst [vmem:[%s294 + $0x38] sm:$0xff] %v743
          %756 = vst [vmem:[%s294 + $0x40] sm:$0xff] %v744
          %757 = vst [vmem:[%s294 + $0x48] sm:$0xff] %v745
          %758 = vst [vmem:[%s294 + $0x50] sm:$0xff] %v746
          %759 = vst [vmem:[%s294 + $0x58] sm:$0xff] %v747
        $region52: #{tpu_custom_call.1} parent=31 // pred_fallthru
          _
        %s760 = sand.u32 %s134, 1
        %s761 = scalar_lea.sflag [#allocation5], %s760
        %s762 = sand.u32 %s134, 1
        %s763 = smul.addr %s762, 96
        %s764 = scalar_lea.vmem [#allocation9], %s763
        // Predicated region
        $region53: #{tpu_custom_call.1} parent=31 // pred_check
          %p765 = pneg %p144
        $region54: #{tpu_custom_call.1} parent=31 // pred_check_branch
          %767 = sbr.rel (%p765) target = $region56
        $region55: #{tpu_custom_call.1} parent=31 // pred_region
          %s768 = smul.u32 6, %s29
          %s769 = smul.u32 2, %s28
          %s771 = ssub.s32 1536, 1536
          %772 = vsyncadd %s761, %s771
          %s773 = smul.addr %s768, 4
          %s774 = sadd.s32 %s769, %s773
          %s775 = smul.addr %s774, 128
          %s776 = scalar_lea.hbm %s3, %s775
          %s777 = sshll.u32 %s764, 4
          %s778 = int_to_ptr.vmem [resolvable:$true] %s777
          %783 = dma.vmem_to_hbm [thread:$0]  %s778, 1536, %s776, %s761, 256, 512, 16
        $region56: #{tpu_custom_call.1} parent=31 // pred_fallthru
          _
      $region32: #{tpu_custom_call.1} parent=5 // pred_fallthru
        _
      %p784 = scmp.le.s32.totalorder 2, %s18
      // Predicated region
      $region57: #{tpu_custom_call.1} parent=5 // pred_check
        %p785 = pneg %p784
      $region58: #{tpu_custom_call.1} parent=5 // pred_check_branch
        %787 = sbr.rel (%p785) target = $region60
      $region59: #{tpu_custom_call.1} parent=5 // pred_region
        %s788 = ssub.s32 %s18, 2
        // Predicated region
        $region61: #{tpu_custom_call.1} parent=59 // pred_check
          %p789 = pneg %p150
        $region62: #{tpu_custom_call.1} parent=59 // pred_check_branch
          %791 = sbr.rel (%p789) target = $region64
        $region63: #{tpu_custom_call.1} parent=59 // pred_region
          %s792 = sand.u32 %s135, 1
          %s793 = scalar_lea.sflag [#allocation5], %s792
          %s794 = sand.u32 %s135, 1
          %s795 = smul.addr %s794, 96
          %s796 = scalar_lea.vmem [#allocation9], %s795
          %797 = dma.done %s793, 1536
        $region64: #{tpu_custom_call.1} parent=59 // pred_fallthru
          _
      $region60: #{tpu_custom_call.1} parent=5 // pred_fallthru
        _
    $region6: #{tpu_custom_call.1} parent=1 // loop_footer
      %s22 = sadd.s32 1, %s18
    $region7: #{tpu_custom_call.1} parent=1 // loop_footer_branch
      %17 = sbr.rel target = $region3
    $region8: #{tpu_custom_call.1} parent=1 // loop_exit
      _
    %798 = vsyncpa [#allocation4], 1
    %s799 = scalar_lea.sflag [#allocation4], 1
    %800 = vsyncpa %s799, 1
    %801 = vsyncpa [#allocation7], 1
    %s802 = scalar_lea.sflag [#allocation7], 1
    %803 = vsyncpa %s802, 1
    %804 = vsyncpa [#allocation5], 1
    %s805 = scalar_lea.sflag [#allocation5], 1
    %806 = vsyncpa %s805, 1

</llo_original>
